<compile_context>
chip_gen: v6e
topology: v6e:2x2x1
jax: 0.10.0
libtpu: 0.0.40
codegen_flags: <defaults>
</compile_context>

<pallas_src>
import jax
import jax.numpy as jnp
from jax.experimental import pallas as pl
from jax.experimental.pallas import tpu as pltpu


def rnn_kernel(ids_ref, emb_ref, par_ref, out_ref):
    """Fused embedding + Elman RNN; writes the last hidden state as (H, B).

    ids_ref: (T, B) int32 token ids (VMEM, one lane-dense tile)
    emb_ref: (vocab*H,) f32 embedding table, row-major (SMEM scalars)
    par_ref: (10,) f32 = [Wih^T (4, row-major), Whh^T (4, row-major), b_ih+b_hh (2)]
             all in SMEM
    out_ref: (H, B) f32 last hidden state, B on lanes
    """
    T, B = ids_ref.shape
    vocab = emb_ref.shape[0] // 2

    ids = ids_ref[...]                                    # (T, B) int32

    # ---- Embedding lookup, fused in-kernel --------------------------------
    # e_k[t, b] = embed_w[ids[t, b], k], built as compare+select over the
    # small vocab: pure VPU, no dynamic VMEM indexing, no wrapper gather.
    # TODO(synk): for large vocab use a scalar-prefetch / DMA row gather.
    e0 = jnp.zeros((T, B), jnp.float32)
    e1 = jnp.zeros((T, B), jnp.float32)
    for v in range(vocab):
        m = ids == v
        e0 = jnp.where(m, emb_ref[2 * v + 0], e0)
        e1 = jnp.where(m, emb_ref[2 * v + 1], e1)

    # ---- Parameters as SMEM scalars (loaded once) --------------------------
    wih00 = par_ref[0]; wih01 = par_ref[1]                # Wih^T[0, :]
    wih10 = par_ref[2]; wih11 = par_ref[3]                # Wih^T[1, :]
    whh00 = par_ref[4]; whh01 = par_ref[5]                # Whh^T[0, :]
    whh10 = par_ref[6]; whh11 = par_ref[7]                # Whh^T[1, :]
    b0 = par_ref[8]; b1 = par_ref[9]                      # b_ih + b_hh

    # ---- Input projection hoisted off the serial chain ---------------------
    # pre_j[t] = x_t @ Wih[:, j] + b_j for ALL timesteps at once.
    pre0 = e0 * wih00 + e1 * wih10 + b0                   # (T, B)
    pre1 = e0 * wih01 + e1 * wih11 + b1                   # (T, B)

    # ---- Hoist loop-invariant Whh broadcasts (JAX doesn't CSE these) -------
    W00 = jnp.full((1, B), whh00, jnp.float32)
    W01 = jnp.full((1, B), whh01, jnp.float32)
    W10 = jnp.full((1, B), whh10, jnp.float32)
    W11 = jnp.full((1, B), whh11, jnp.float32)

    # ---- Serial recurrence: h carried as two (1, B) lane-dense rows --------
    # h_0 == 0  =>  step 0 is just tanh(pre[0])  (dead h0 @ Whh removed).
    h0 = jnp.tanh(pre0[0:1, :])                           # (1, B)
    h1 = jnp.tanh(pre1[0:1, :])                           # (1, B)
    # Fully unrolled: T is a small static trace-time constant.
    # TODO(synk): for large T switch to lax.fori_loop(..., unroll=k) with pre
    # in a VMEM scratch to bound live ranges.
    for t in range(1, T):
        a0 = pre0[t:t + 1, :] + h0 * W00 + h1 * W10
        a1 = pre1[t:t + 1, :] + h0 * W01 + h1 * W11
        h0 = jnp.tanh(a0)
        h1 = jnp.tanh(a1)

    out_ref[0:1, :] = h0
    out_ref[1:2, :] = h1


def rnn_forward(inputs, embed_w, w_ih, w_hh, b_ih, b_hh):
    """inputs: (B, T) integer token ids.  Returns squeeze of (B, H) last state."""
    B, T = inputs.shape
    vocab, H = embed_w.shape
    assert H == 2, "kernel is specialized for the module's fixed hidden_size=2"

    # Tiny wrapper-side prep (bytes, not an activation pass):
    ids_tb = jnp.transpose(inputs).astype(jnp.int32)           # (T, B)
    emb_flat = embed_w.reshape(-1).astype(jnp.float32)         # (vocab*H,)
    wih_t = jnp.transpose(w_ih).astype(jnp.float32)            # (H_in, H_out)
    whh_t = jnp.transpose(w_hh).astype(jnp.float32)            # (H_in, H_out)
    bias = (b_ih + b_hh).astype(jnp.float32)                   # (H,)
    params = jnp.concatenate(
        [wih_t.reshape(-1), whh_t.reshape(-1), bias.reshape(-1)])  # (10,)

    # Single pallas_call handles the whole batch (one invocation; at real
    # batch sizes add a "parallel" batch grid axis to use both v7x TCs).
    out_hb = pl.pallas_call(
        rnn_kernel,
        out_shape=jax.ShapeDtypeStruct((H, B), jnp.float32),
        in_specs=[
            pl.BlockSpec((T, B), lambda: (0, 0)),                     # ids, VMEM
            pl.BlockSpec(memory_space=pltpu.MemorySpace.SMEM),        # embedding
            pl.BlockSpec(memory_space=pltpu.MemorySpace.SMEM),        # params
        ],
        out_specs=pl.BlockSpec((H, B), lambda: (0, 0)),
    )(ids_tb, emb_flat, params)

    # torch.squeeze(encoded[:, -1]) — kernel emits (H, B); flip to (B, H).
    return jnp.squeeze(jnp.transpose(out_hb))


def rnn_reference(inputs, embed_w, w_ih, w_hh, b_ih, b_hh):
    """Pure-JAX reference for correctness checking."""
    x = embed_w[inputs].astype(jnp.float32)  # (B, T, H)
    B, T, H = x.shape
    h = jnp.zeros((B, H), jnp.float32)
    for t in range(T):
        h = jnp.tanh(x[:, t] @ w_ih.T + b_ih + h @ w_hh.T + b_hh)
    return jnp.squeeze(h)


if __name__ == "__main__":
    # Shapes consistent with the module: hidden_size=2 (fixed),
    # input_size (vocab) = 16, batch = 2, sequence length = 8.
    input_size = 16
    hidden_size = 2
    B, T = 2, 8
    max_init_weight = 0.1  # stand-in for configs.Training.max_init_weight

    key = jax.random.PRNGKey(0)
    k_in, k_emb, k_wih, k_whh, k_bih, k_bhh = jax.random.split(key, 6)

    inputs = jax.random.randint(k_in, (B, T), 0, input_size, dtype=jnp.int32)

    # Embedding: uniform(-max_init_weight, +max_init_weight), like .data.uniform_.
    embed_w = jax.random.uniform(
        k_emb, (input_size, hidden_size), jnp.float32,
        -max_init_weight, max_init_weight)

    # nn.RNN default init: uniform(-1/sqrt(H), 1/sqrt(H)).
    bound = 1.0 / jnp.sqrt(jnp.float32(hidden_size))
    w_ih = jax.random.uniform(k_wih, (hidden_size, hidden_size), jnp.float32, -bound, bound)
    w_hh = jax.random.uniform(k_whh, (hidden_size, hidden_size), jnp.float32, -bound, bound)
    b_ih = jax.random.uniform(k_bih, (hidden_size,), jnp.float32, -bound, bound)
    b_hh = jax.random.uniform(k_bhh, (hidden_size,), jnp.float32, -bound, bound)

    fwd = jax.jit(rnn_forward)
    out = fwd(inputs, embed_w, w_ih, w_hh, b_ih, b_hh)
    out = jax.block_until_ready(out)

    ref = rnn_reference(inputs, embed_w, w_ih, w_hh, b_ih, b_hh)
    assert out.shape == (B, hidden_size), out.shape
    assert jnp.allclose(out, ref, atol=1e-5, rtol=1e-5), (out, ref)

    print("KERNEL_OK")
</pallas_src>

<mosaic_0001>
module attributes {stable_mosaic.version = 11 : i64} {
  func.func @rnn_kernel(%arg0: memref<8x2xi32, #tpu.memory_space<vmem>>, %arg1: memref<32xf32, #tpu.memory_space<smem>>, %arg2: memref<10xf32, #tpu.memory_space<smem>>, %arg3: memref<2x2xf32, #tpu.memory_space<vmem>>) attributes {dimension_semantics = [], scalar_prefetch = 0 : i64, scratch_operands = 0 : i64, tpu.core_type = #tpu.core_type<tc>} {
    %c0 = arith.constant 0 : index
    %c0_0 = arith.constant 0 : index
    %0 = vector.load %arg0[%c0, %c0_0] : memref<8x2xi32, #tpu.memory_space<vmem>>, vector<8x2xi32>
    %cst = arith.constant 0.000000e+00 : f32
    %1 = vector.broadcast %cst : f32 to vector<8x2xf32>
    %cst_1 = arith.constant 0.000000e+00 : f32
    %2 = vector.broadcast %cst_1 : f32 to vector<8x2xf32>
    %c0_i32 = arith.constant 0 : i32
    %3 = vector.broadcast %c0_i32 : i32 to vector<8x2xi32>
    %4 = arith.cmpi eq, %0, %3 : vector<8x2xi32>
    %c0_2 = arith.constant 0 : index
    %5 = memref.load %arg1[%c0_2] : memref<32xf32, #tpu.memory_space<smem>>
    %6 = vector.broadcast %5 : f32 to vector<8x2xf32>
    %7 = arith.select %4, %6, %1 : vector<8x2xi1>, vector<8x2xf32>
    %c1 = arith.constant 1 : index
    %8 = memref.load %arg1[%c1] : memref<32xf32, #tpu.memory_space<smem>>
    %9 = vector.broadcast %8 : f32 to vector<8x2xf32>
    %10 = arith.select %4, %9, %2 : vector<8x2xi1>, vector<8x2xf32>
    %c1_i32 = arith.constant 1 : i32
    %11 = vector.broadcast %c1_i32 : i32 to vector<8x2xi32>
    %12 = arith.cmpi eq, %0, %11 : vector<8x2xi32>
    %c2 = arith.constant 2 : index
    %13 = memref.load %arg1[%c2] : memref<32xf32, #tpu.memory_space<smem>>
    %14 = vector.broadcast %13 : f32 to vector<8x2xf32>
    %15 = arith.select %12, %14, %7 : vector<8x2xi1>, vector<8x2xf32>
    %c3 = arith.constant 3 : index
    %16 = memref.load %arg1[%c3] : memref<32xf32, #tpu.memory_space<smem>>
    %17 = vector.broadcast %16 : f32 to vector<8x2xf32>
    %18 = arith.select %12, %17, %10 : vector<8x2xi1>, vector<8x2xf32>
    %c2_i32 = arith.constant 2 : i32
    %19 = vector.broadcast %c2_i32 : i32 to vector<8x2xi32>
    %20 = arith.cmpi eq, %0, %19 : vector<8x2xi32>
    %c4 = arith.constant 4 : index
    %21 = memref.load %arg1[%c4] : memref<32xf32, #tpu.memory_space<smem>>
    %22 = vector.broadcast %21 : f32 to vector<8x2xf32>
    %23 = arith.select %20, %22, %15 : vector<8x2xi1>, vector<8x2xf32>
    %c5 = arith.constant 5 : index
    %24 = memref.load %arg1[%c5] : memref<32xf32, #tpu.memory_space<smem>>
    %25 = vector.broadcast %24 : f32 to vector<8x2xf32>
    %26 = arith.select %20, %25, %18 : vector<8x2xi1>, vector<8x2xf32>
    %c3_i32 = arith.constant 3 : i32
    %27 = vector.broadcast %c3_i32 : i32 to vector<8x2xi32>
    %28 = arith.cmpi eq, %0, %27 : vector<8x2xi32>
    %c6 = arith.constant 6 : index
    %29 = memref.load %arg1[%c6] : memref<32xf32, #tpu.memory_space<smem>>
    %30 = vector.broadcast %29 : f32 to vector<8x2xf32>
    %31 = arith.select %28, %30, %23 : vector<8x2xi1>, vector<8x2xf32>
    %c7 = arith.constant 7 : index
    %32 = memref.load %arg1[%c7] : memref<32xf32, #tpu.memory_space<smem>>
    %33 = vector.broadcast %32 : f32 to vector<8x2xf32>
    %34 = arith.select %28, %33, %26 : vector<8x2xi1>, vector<8x2xf32>
    %c4_i32 = arith.constant 4 : i32
    %35 = vector.broadcast %c4_i32 : i32 to vector<8x2xi32>
    %36 = arith.cmpi eq, %0, %35 : vector<8x2xi32>
    %c8 = arith.constant 8 : index
    %37 = memref.load %arg1[%c8] : memref<32xf32, #tpu.memory_space<smem>>
    %38 = vector.broadcast %37 : f32 to vector<8x2xf32>
    %39 = arith.select %36, %38, %31 : vector<8x2xi1>, vector<8x2xf32>
    %c9 = arith.constant 9 : index
    %40 = memref.load %arg1[%c9] : memref<32xf32, #tpu.memory_space<smem>>
    %41 = vector.broadcast %40 : f32 to vector<8x2xf32>
    %42 = arith.select %36, %41, %34 : vector<8x2xi1>, vector<8x2xf32>
    %c5_i32 = arith.constant 5 : i32
    %43 = vector.broadcast %c5_i32 : i32 to vector<8x2xi32>
    %44 = arith.cmpi eq, %0, %43 : vector<8x2xi32>
    %c10 = arith.constant 10 : index
    %45 = memref.load %arg1[%c10] : memref<32xf32, #tpu.memory_space<smem>>
    %46 = vector.broadcast %45 : f32 to vector<8x2xf32>
    %47 = arith.select %44, %46, %39 : vector<8x2xi1>, vector<8x2xf32>
    %c11 = arith.constant 11 : index
    %48 = memref.load %arg1[%c11] : memref<32xf32, #tpu.memory_space<smem>>
    %49 = vector.broadcast %48 : f32 to vector<8x2xf32>
    %50 = arith.select %44, %49, %42 : vector<8x2xi1>, vector<8x2xf32>
    %c6_i32 = arith.constant 6 : i32
    %51 = vector.broadcast %c6_i32 : i32 to vector<8x2xi32>
    %52 = arith.cmpi eq, %0, %51 : vector<8x2xi32>
    %c12 = arith.constant 12 : index
    %53 = memref.load %arg1[%c12] : memref<32xf32, #tpu.memory_space<smem>>
    %54 = vector.broadcast %53 : f32 to vector<8x2xf32>
    %55 = arith.select %52, %54, %47 : vector<8x2xi1>, vector<8x2xf32>
    %c13 = arith.constant 13 : index
    %56 = memref.load %arg1[%c13] : memref<32xf32, #tpu.memory_space<smem>>
    %57 = vector.broadcast %56 : f32 to vector<8x2xf32>
    %58 = arith.select %52, %57, %50 : vector<8x2xi1>, vector<8x2xf32>
    %c7_i32 = arith.constant 7 : i32
    %59 = vector.broadcast %c7_i32 : i32 to vector<8x2xi32>
    %60 = arith.cmpi eq, %0, %59 : vector<8x2xi32>
    %c14 = arith.constant 14 : index
    %61 = memref.load %arg1[%c14] : memref<32xf32, #tpu.memory_space<smem>>
    %62 = vector.broadcast %61 : f32 to vector<8x2xf32>
    %63 = arith.select %60, %62, %55 : vector<8x2xi1>, vector<8x2xf32>
    %c15 = arith.constant 15 : index
    %64 = memref.load %arg1[%c15] : memref<32xf32, #tpu.memory_space<smem>>
    %65 = vector.broadcast %64 : f32 to vector<8x2xf32>
    %66 = arith.select %60, %65, %58 : vector<8x2xi1>, vector<8x2xf32>
    %c8_i32 = arith.constant 8 : i32
    %67 = vector.broadcast %c8_i32 : i32 to vector<8x2xi32>
    %68 = arith.cmpi eq, %0, %67 : vector<8x2xi32>
    %c16 = arith.constant 16 : index
    %69 = memref.load %arg1[%c16] : memref<32xf32, #tpu.memory_space<smem>>
    %70 = vector.broadcast %69 : f32 to vector<8x2xf32>
    %71 = arith.select %68, %70, %63 : vector<8x2xi1>, vector<8x2xf32>
    %c17 = arith.constant 17 : index
    %72 = memref.load %arg1[%c17] : memref<32xf32, #tpu.memory_space<smem>>
    %73 = vector.broadcast %72 : f32 to vector<8x2xf32>
    %74 = arith.select %68, %73, %66 : vector<8x2xi1>, vector<8x2xf32>
    %c9_i32 = arith.constant 9 : i32
    %75 = vector.broadcast %c9_i32 : i32 to vector<8x2xi32>
    %76 = arith.cmpi eq, %0, %75 : vector<8x2xi32>
    %c18 = arith.constant 18 : index
    %77 = memref.load %arg1[%c18] : memref<32xf32, #tpu.memory_space<smem>>
    %78 = vector.broadcast %77 : f32 to vector<8x2xf32>
    %79 = arith.select %76, %78, %71 : vector<8x2xi1>, vector<8x2xf32>
    %c19 = arith.constant 19 : index
    %80 = memref.load %arg1[%c19] : memref<32xf32, #tpu.memory_space<smem>>
    %81 = vector.broadcast %80 : f32 to vector<8x2xf32>
    %82 = arith.select %76, %81, %74 : vector<8x2xi1>, vector<8x2xf32>
    %c10_i32 = arith.constant 10 : i32
    %83 = vector.broadcast %c10_i32 : i32 to vector<8x2xi32>
    %84 = arith.cmpi eq, %0, %83 : vector<8x2xi32>
    %c20 = arith.constant 20 : index
    %85 = memref.load %arg1[%c20] : memref<32xf32, #tpu.memory_space<smem>>
    %86 = vector.broadcast %85 : f32 to vector<8x2xf32>
    %87 = arith.select %84, %86, %79 : vector<8x2xi1>, vector<8x2xf32>
    %c21 = arith.constant 21 : index
    %88 = memref.load %arg1[%c21] : memref<32xf32, #tpu.memory_space<smem>>
    %89 = vector.broadcast %88 : f32 to vector<8x2xf32>
    %90 = arith.select %84, %89, %82 : vector<8x2xi1>, vector<8x2xf32>
    %c11_i32 = arith.constant 11 : i32
    %91 = vector.broadcast %c11_i32 : i32 to vector<8x2xi32>
    %92 = arith.cmpi eq, %0, %91 : vector<8x2xi32>
    %c22 = arith.constant 22 : index
    %93 = memref.load %arg1[%c22] : memref<32xf32, #tpu.memory_space<smem>>
    %94 = vector.broadcast %93 : f32 to vector<8x2xf32>
    %95 = arith.select %92, %94, %87 : vector<8x2xi1>, vector<8x2xf32>
    %c23 = arith.constant 23 : index
    %96 = memref.load %arg1[%c23] : memref<32xf32, #tpu.memory_space<smem>>
    %97 = vector.broadcast %96 : f32 to vector<8x2xf32>
    %98 = arith.select %92, %97, %90 : vector<8x2xi1>, vector<8x2xf32>
    %c12_i32 = arith.constant 12 : i32
    %99 = vector.broadcast %c12_i32 : i32 to vector<8x2xi32>
    %100 = arith.cmpi eq, %0, %99 : vector<8x2xi32>
    %c24 = arith.constant 24 : index
    %101 = memref.load %arg1[%c24] : memref<32xf32, #tpu.memory_space<smem>>
    %102 = vector.broadcast %101 : f32 to vector<8x2xf32>
    %103 = arith.select %100, %102, %95 : vector<8x2xi1>, vector<8x2xf32>
    %c25 = arith.constant 25 : index
    %104 = memref.load %arg1[%c25] : memref<32xf32, #tpu.memory_space<smem>>
    %105 = vector.broadcast %104 : f32 to vector<8x2xf32>
    %106 = arith.select %100, %105, %98 : vector<8x2xi1>, vector<8x2xf32>
    %c13_i32 = arith.constant 13 : i32
    %107 = vector.broadcast %c13_i32 : i32 to vector<8x2xi32>
    %108 = arith.cmpi eq, %0, %107 : vector<8x2xi32>
    %c26 = arith.constant 26 : index
    %109 = memref.load %arg1[%c26] : memref<32xf32, #tpu.memory_space<smem>>
    %110 = vector.broadcast %109 : f32 to vector<8x2xf32>
    %111 = arith.select %108, %110, %103 : vector<8x2xi1>, vector<8x2xf32>
    %c27 = arith.constant 27 : index
    %112 = memref.load %arg1[%c27] : memref<32xf32, #tpu.memory_space<smem>>
    %113 = vector.broadcast %112 : f32 to vector<8x2xf32>
    %114 = arith.select %108, %113, %106 : vector<8x2xi1>, vector<8x2xf32>
    %c14_i32 = arith.constant 14 : i32
    %115 = vector.broadcast %c14_i32 : i32 to vector<8x2xi32>
    %116 = arith.cmpi eq, %0, %115 : vector<8x2xi32>
    %c28 = arith.constant 28 : index
    %117 = memref.load %arg1[%c28] : memref<32xf32, #tpu.memory_space<smem>>
    %118 = vector.broadcast %117 : f32 to vector<8x2xf32>
    %119 = arith.select %116, %118, %111 : vector<8x2xi1>, vector<8x2xf32>
    %c29 = arith.constant 29 : index
    %120 = memref.load %arg1[%c29] : memref<32xf32, #tpu.memory_space<smem>>
    %121 = vector.broadcast %120 : f32 to vector<8x2xf32>
    %122 = arith.select %116, %121, %114 : vector<8x2xi1>, vector<8x2xf32>
    %c15_i32 = arith.constant 15 : i32
    %123 = vector.broadcast %c15_i32 : i32 to vector<8x2xi32>
    %124 = arith.cmpi eq, %0, %123 : vector<8x2xi32>
    %c30 = arith.constant 30 : index
    %125 = memref.load %arg1[%c30] : memref<32xf32, #tpu.memory_space<smem>>
    %126 = vector.broadcast %125 : f32 to vector<8x2xf32>
    %127 = arith.select %124, %126, %119 : vector<8x2xi1>, vector<8x2xf32>
    %c31 = arith.constant 31 : index
    %128 = memref.load %arg1[%c31] : memref<32xf32, #tpu.memory_space<smem>>
    %129 = vector.broadcast %128 : f32 to vector<8x2xf32>
    %130 = arith.select %124, %129, %122 : vector<8x2xi1>, vector<8x2xf32>
    %c0_3 = arith.constant 0 : index
    %131 = memref.load %arg2[%c0_3] : memref<10xf32, #tpu.memory_space<smem>>
    %c1_4 = arith.constant 1 : index
    %132 = memref.load %arg2[%c1_4] : memref<10xf32, #tpu.memory_space<smem>>
    %c2_5 = arith.constant 2 : index
    %133 = memref.load %arg2[%c2_5] : memref<10xf32, #tpu.memory_space<smem>>
    %c3_6 = arith.constant 3 : index
    %134 = memref.load %arg2[%c3_6] : memref<10xf32, #tpu.memory_space<smem>>
    %c4_7 = arith.constant 4 : index
    %135 = memref.load %arg2[%c4_7] : memref<10xf32, #tpu.memory_space<smem>>
    %c5_8 = arith.constant 5 : index
    %136 = memref.load %arg2[%c5_8] : memref<10xf32, #tpu.memory_space<smem>>
    %c6_9 = arith.constant 6 : index
    %137 = memref.load %arg2[%c6_9] : memref<10xf32, #tpu.memory_space<smem>>
    %c7_10 = arith.constant 7 : index
    %138 = memref.load %arg2[%c7_10] : memref<10xf32, #tpu.memory_space<smem>>
    %c8_11 = arith.constant 8 : index
    %139 = memref.load %arg2[%c8_11] : memref<10xf32, #tpu.memory_space<smem>>
    %c9_12 = arith.constant 9 : index
    %140 = memref.load %arg2[%c9_12] : memref<10xf32, #tpu.memory_space<smem>>
    %141 = vector.broadcast %131 : f32 to vector<8x2xf32>
    %142 = arith.mulf %127, %141 : vector<8x2xf32>
    %143 = vector.broadcast %133 : f32 to vector<8x2xf32>
    %144 = arith.mulf %130, %143 : vector<8x2xf32>
    %145 = arith.addf %142, %144 : vector<8x2xf32>
    %146 = vector.broadcast %139 : f32 to vector<8x2xf32>
    %147 = arith.addf %145, %146 : vector<8x2xf32>
    %148 = vector.broadcast %132 : f32 to vector<8x2xf32>
    %149 = arith.mulf %127, %148 : vector<8x2xf32>
    %150 = vector.broadcast %134 : f32 to vector<8x2xf32>
    %151 = arith.mulf %130, %150 : vector<8x2xf32>
    %152 = arith.addf %149, %151 : vector<8x2xf32>
    %153 = vector.broadcast %140 : f32 to vector<8x2xf32>
    %154 = arith.addf %152, %153 : vector<8x2xf32>
    %155 = vector.broadcast %135 : f32 to vector<1x2xf32>
    %156 = vector.broadcast %136 : f32 to vector<1x2xf32>
    %157 = vector.broadcast %137 : f32 to vector<1x2xf32>
    %158 = vector.broadcast %138 : f32 to vector<1x2xf32>
    %159 = vector.extract_strided_slice %147 {offsets = [0, 0], sizes = [1, 2], strides = [1, 1]} : vector<8x2xf32> to vector<1x2xf32>
    %160 = math.tanh %159 : vector<1x2xf32>
    %161 = vector.extract_strided_slice %154 {offsets = [0, 0], sizes = [1, 2], strides = [1, 1]} : vector<8x2xf32> to vector<1x2xf32>
    %162 = math.tanh %161 : vector<1x2xf32>
    %163 = vector.extract_strided_slice %147 {offsets = [1, 0], sizes = [1, 2], strides = [1, 1]} : vector<8x2xf32> to vector<1x2xf32>
    %164 = arith.mulf %160, %155 : vector<1x2xf32>
    %165 = arith.addf %163, %164 : vector<1x2xf32>
    %166 = arith.mulf %162, %157 : vector<1x2xf32>
    %167 = arith.addf %165, %166 : vector<1x2xf32>
    %168 = vector.extract_strided_slice %154 {offsets = [1, 0], sizes = [1, 2], strides = [1, 1]} : vector<8x2xf32> to vector<1x2xf32>
    %169 = arith.mulf %160, %156 : vector<1x2xf32>
    %170 = arith.addf %168, %169 : vector<1x2xf32>
    %171 = arith.mulf %162, %158 : vector<1x2xf32>
    %172 = arith.addf %170, %171 : vector<1x2xf32>
    %173 = math.tanh %167 : vector<1x2xf32>
    %174 = math.tanh %172 : vector<1x2xf32>
    %175 = vector.extract_strided_slice %147 {offsets = [2, 0], sizes = [1, 2], strides = [1, 1]} : vector<8x2xf32> to vector<1x2xf32>
    %176 = arith.mulf %173, %155 : vector<1x2xf32>
    %177 = arith.addf %175, %176 : vector<1x2xf32>
    %178 = arith.mulf %174, %157 : vector<1x2xf32>
    %179 = arith.addf %177, %178 : vector<1x2xf32>
    %180 = vector.extract_strided_slice %154 {offsets = [2, 0], sizes = [1, 2], strides = [1, 1]} : vector<8x2xf32> to vector<1x2xf32>
    %181 = arith.mulf %173, %156 : vector<1x2xf32>
    %182 = arith.addf %180, %181 : vector<1x2xf32>
    %183 = arith.mulf %174, %158 : vector<1x2xf32>
    %184 = arith.addf %182, %183 : vector<1x2xf32>
    %185 = math.tanh %179 : vector<1x2xf32>
    %186 = math.tanh %184 : vector<1x2xf32>
    %187 = vector.extract_strided_slice %147 {offsets = [3, 0], sizes = [1, 2], strides = [1, 1]} : vector<8x2xf32> to vector<1x2xf32>
    %188 = arith.mulf %185, %155 : vector<1x2xf32>
    %189 = arith.addf %187, %188 : vector<1x2xf32>
    %190 = arith.mulf %186, %157 : vector<1x2xf32>
    %191 = arith.addf %189, %190 : vector<1x2xf32>
    %192 = vector.extract_strided_slice %154 {offsets = [3, 0], sizes = [1, 2], strides = [1, 1]} : vector<8x2xf32> to vector<1x2xf32>
    %193 = arith.mulf %185, %156 : vector<1x2xf32>
    %194 = arith.addf %192, %193 : vector<1x2xf32>
    %195 = arith.mulf %186, %158 : vector<1x2xf32>
    %196 = arith.addf %194, %195 : vector<1x2xf32>
    %197 = math.tanh %191 : vector<1x2xf32>
    %198 = math.tanh %196 : vector<1x2xf32>
    %199 = vector.extract_strided_slice %147 {offsets = [4, 0], sizes = [1, 2], strides = [1, 1]} : vector<8x2xf32> to vector<1x2xf32>
    %200 = arith.mulf %197, %155 : vector<1x2xf32>
    %201 = arith.addf %199, %200 : vector<1x2xf32>
    %202 = arith.mulf %198, %157 : vector<1x2xf32>
    %203 = arith.addf %201, %202 : vector<1x2xf32>
    %204 = vector.extract_strided_slice %154 {offsets = [4, 0], sizes = [1, 2], strides = [1, 1]} : vector<8x2xf32> to vector<1x2xf32>
    %205 = arith.mulf %197, %156 : vector<1x2xf32>
    %206 = arith.addf %204, %205 : vector<1x2xf32>
    %207 = arith.mulf %198, %158 : vector<1x2xf32>
    %208 = arith.addf %206, %207 : vector<1x2xf32>
    %209 = math.tanh %203 : vector<1x2xf32>
    %210 = math.tanh %208 : vector<1x2xf32>
    %211 = vector.extract_strided_slice %147 {offsets = [5, 0], sizes = [1, 2], strides = [1, 1]} : vector<8x2xf32> to vector<1x2xf32>
    %212 = arith.mulf %209, %155 : vector<1x2xf32>
    %213 = arith.addf %211, %212 : vector<1x2xf32>
    %214 = arith.mulf %210, %157 : vector<1x2xf32>
    %215 = arith.addf %213, %214 : vector<1x2xf32>
    %216 = vector.extract_strided_slice %154 {offsets = [5, 0], sizes = [1, 2], strides = [1, 1]} : vector<8x2xf32> to vector<1x2xf32>
    %217 = arith.mulf %209, %156 : vector<1x2xf32>
    %218 = arith.addf %216, %217 : vector<1x2xf32>
    %219 = arith.mulf %210, %158 : vector<1x2xf32>
    %220 = arith.addf %218, %219 : vector<1x2xf32>
    %221 = math.tanh %215 : vector<1x2xf32>
    %222 = math.tanh %220 : vector<1x2xf32>
    %223 = vector.extract_strided_slice %147 {offsets = [6, 0], sizes = [1, 2], strides = [1, 1]} : vector<8x2xf32> to vector<1x2xf32>
    %224 = arith.mulf %221, %155 : vector<1x2xf32>
    %225 = arith.addf %223, %224 : vector<1x2xf32>
    %226 = arith.mulf %222, %157 : vector<1x2xf32>
    %227 = arith.addf %225, %226 : vector<1x2xf32>
    %228 = vector.extract_strided_slice %154 {offsets = [6, 0], sizes = [1, 2], strides = [1, 1]} : vector<8x2xf32> to vector<1x2xf32>
    %229 = arith.mulf %221, %156 : vector<1x2xf32>
    %230 = arith.addf %228, %229 : vector<1x2xf32>
    %231 = arith.mulf %222, %158 : vector<1x2xf32>
    %232 = arith.addf %230, %231 : vector<1x2xf32>
    %233 = math.tanh %227 : vector<1x2xf32>
    %234 = math.tanh %232 : vector<1x2xf32>
    %235 = vector.extract_strided_slice %147 {offsets = [7, 0], sizes = [1, 2], strides = [1, 1]} : vector<8x2xf32> to vector<1x2xf32>
    %236 = arith.mulf %233, %155 : vector<1x2xf32>
    %237 = arith.addf %235, %236 : vector<1x2xf32>
    %238 = arith.mulf %234, %157 : vector<1x2xf32>
    %239 = arith.addf %237, %238 : vector<1x2xf32>
    %240 = vector.extract_strided_slice %154 {offsets = [7, 0], sizes = [1, 2], strides = [1, 1]} : vector<8x2xf32> to vector<1x2xf32>
    %241 = arith.mulf %233, %156 : vector<1x2xf32>
    %242 = arith.addf %240, %241 : vector<1x2xf32>
    %243 = arith.mulf %234, %158 : vector<1x2xf32>
    %244 = arith.addf %242, %243 : vector<1x2xf32>
    %245 = math.tanh %239 : vector<1x2xf32>
    %246 = math.tanh %244 : vector<1x2xf32>
    %c0_13 = arith.constant 0 : index
    %c0_14 = arith.constant 0 : index
    %247 = vector.load %arg3[%c0_13, %c0_14] : memref<2x2xf32, #tpu.memory_space<vmem>>, vector<1x2xf32>
    tpu.vector_store %arg3[%c0_13, %c0_14], %245 {strides = array<i32>} : memref<2x2xf32, #tpu.memory_space<vmem>>, vector<1x2xf32>,
    %c1_15 = arith.constant 1 : index
    %c0_16 = arith.constant 0 : index
    %248 = vector.load %arg3[%c1_15, %c0_16] : memref<2x2xf32, #tpu.memory_space<vmem>>, vector<1x2xf32>
    tpu.vector_store %arg3[%c1_15, %c0_16], %246 {strides = array<i32>} : memref<2x2xf32, #tpu.memory_space<vmem>>, vector<1x2xf32>,
    return
  }
}

</mosaic_0001>

<llo_original>
// kernel: rnn_forward.1
$region0: #{rnn_forward.1}
  #allocation0 [shape = 'u32[]', space=smem, size = 0x4, offset = 0x4, fixed_abs, tag = 'smem constant byte address 0x4 - core index']
  #allocation1 [shape = 'u32[144,128]{1,0:T(1,128)}', space=vmem, size = 0x12000, scoped, tag = 'internal scratch']
  %s0 = inlined_call_operand.vmem [shape: s32[8,2], index: 0, kind: input, shape index: {}]
  %s1 = inlined_call_operand.vmem [shape: f32[32], index: 1, kind: input, shape index: {}]
  %s2 = inlined_call_operand.vmem [shape: f32[10], index: 2, kind: input, shape index: {}]
  %s3 = inlined_call_operand.vmem [shape: f32[2,2], index: 3, kind: output, shape index: {}]
  %s4 = sld [smem:[#allocation0]]
  $region30: #{rnn_forward.1} parent=0
    _
  %s6 = ssub.s32 1, %s4
  %s7 = scalar_select 0, %s6, %s4
  $region1: #{rnn_forward.1} parent=0
    #allocation2 [shape = 'u8[512]{0}', space=smem, size = 0x200, scoped, tag = 'input window, operand 1, single buffered']
    #allocation3 [shape = 's32[1]{0}', space=sflag, size = 0x4, scoped, tag = 'scoped memory for rnn_forward.1']
    #allocation4 [shape = 'u8[512]{0}', space=smem, size = 0x200, scoped, tag = 'input window, operand 2, single buffered']
    #allocation5 [shape = 's32[1]{0}', space=sflag, size = 0x4, scoped, tag = 'scoped memory for rnn_forward.1']
    %8 = vsyncpa [#allocation3], 0
    %9 = vsyncpa [#allocation5], 0
    // Predicated region
    $region2: #{rnn_forward.1} parent=1 // pred_check
      _
    $region3: #{rnn_forward.1} parent=1 // pred_check_branch
      %11 = sbr.rel (0) target = $region5
    $region4: #{rnn_forward.1} parent=1 // pred_region
      _
    $region5: #{rnn_forward.1} parent=1 // pred_fallthru
      _
    // Predicated region
    $region6: #{rnn_forward.1} parent=1 // pred_check
      _
    $region7: #{rnn_forward.1} parent=1 // pred_check_branch
      %13 = sbr.rel (0) target = $region9
    $region8: #{rnn_forward.1} parent=1 // pred_region
      %s15 = ssub.s32 16, 16
      %16 = vsyncadd [#allocation3], %s15
      %s18 = sshll.u32 %s1, 4
      %s19 = int_to_ptr.vmem [resolvable:$true] %s18
      %21 = dma.vmem_to_smem %s19, 16, [#allocation2], [#allocation3]
    $region9: #{rnn_forward.1} parent=1 // pred_fallthru
      _
    // Predicated region
    $region10: #{rnn_forward.1} parent=1 // pred_check
      _
    $region11: #{rnn_forward.1} parent=1 // pred_check_branch
      %23 = sbr.rel (0) target = $region13
    $region12: #{rnn_forward.1} parent=1 // pred_region
      %s25 = ssub.s32 16, 16
      %26 = vsyncadd [#allocation5], %s25
      %s28 = sshll.u32 %s2, 4
      %s29 = int_to_ptr.vmem [resolvable:$true] %s28
      %31 = dma.vmem_to_smem %s29, 16, [#allocation4], [#allocation5]
    $region13: #{rnn_forward.1} parent=1 // pred_fallthru
      _
    // Predicated region
    $region14: #{rnn_forward.1} parent=1 // pred_check
      _
    $region15: #{rnn_forward.1} parent=1 // pred_check_branch
      %33 = sbr.rel (0) target = $region17
    $region16: #{rnn_forward.1} parent=1 // pred_region
      %34 = dma.done [#allocation3], 16
    $region17: #{rnn_forward.1} parent=1 // pred_fallthru
      _
    // Predicated region
    $region18: #{rnn_forward.1} parent=1 // pred_check
      _
    $region19: #{rnn_forward.1} parent=1 // pred_check_branch
      %36 = sbr.rel (0) target = $region21
    $region20: #{rnn_forward.1} parent=1 // pred_region
      %37 = dma.done [#allocation5], 16
    $region21: #{rnn_forward.1} parent=1 // pred_fallthru
      _
    %38 = sfence
    %v39 = vld [vmem:[%s0] sm:$0xff]
    %vm40 = vcmp.eq.s32.totalorder %v39, 0
    %s41 = sld [smem:[#allocation2]]
    %v42 = vstv %s41
    %v43 = vsel %vm40, %v42, 0.0
    %s44 = sld [smem:[#allocation2 + $0x1]]
    %v45 = vstv %s44
    %v46 = vsel %vm40, %v45, 0.0
    %vm47 = vcmp.eq.s32.totalorder %v39, 1
    %s48 = sld [smem:[#allocation2 + $0x2]]
    %v49 = vstv %s48
    %v50 = vsel %vm47, %v49, %v43
    %s51 = sld [smem:[#allocation2 + $0x3]]
    %v52 = vstv %s51
    %v53 = vsel %vm47, %v52, %v46
    %vm54 = vcmp.eq.s32.totalorder %v39, 2
    %s55 = sld [smem:[#allocation2 + $0x4]]
    %v56 = vstv %s55
    %v57 = vsel %vm54, %v56, %v50
    %s58 = sld [smem:[#allocation2 + $0x5]]
    %v59 = vstv %s58
    %v60 = vsel %vm54, %v59, %v53
    %vm61 = vcmp.eq.s32.totalorder %v39, 3
    %s62 = sld [smem:[#allocation2 + $0x6]]
    %v63 = vstv %s62
    %v64 = vsel %vm61, %v63, %v57
    %s65 = sld [smem:[#allocation2 + $0x7]]
    %v66 = vstv %s65
    %v67 = vsel %vm61, %v66, %v60
    %vm68 = vcmp.eq.s32.totalorder %v39, 4
    %s69 = sld [smem:[#allocation2 + $0x8]]
    %v70 = vstv %s69
    %v71 = vsel %vm68, %v70, %v64
    %s72 = sld [smem:[#allocation2 + $0x9]]
    %v73 = vstv %s72
    %v74 = vsel %vm68, %v73, %v67
    %vm75 = vcmp.eq.s32.totalorder %v39, 5
    %s76 = sld [smem:[#allocation2 + $0xa]]
    %v77 = vstv %s76
    %v78 = vsel %vm75, %v77, %v71
    %s79 = sld [smem:[#allocation2 + $0xb]]
    %v80 = vstv %s79
    %v81 = vsel %vm75, %v80, %v74
    %vm82 = vcmp.eq.s32.totalorder %v39, 6
    %s83 = sld [smem:[#allocation2 + $0xc]]
    %v84 = vstv %s83
    %v85 = vsel %vm82, %v84, %v78
    %s86 = sld [smem:[#allocation2 + $0xd]]
    %v87 = vstv %s86
    %v88 = vsel %vm82, %v87, %v81
    %vm89 = vcmp.eq.s32.totalorder %v39, 7
    %s90 = sld [smem:[#allocation2 + $0xe]]
    %v91 = vstv %s90
    %v92 = vsel %vm89, %v91, %v85
    %s93 = sld [smem:[#allocation2 + $0xf]]
    %v94 = vstv %s93
    %v95 = vsel %vm89, %v94, %v88
    %vm96 = vcmp.eq.s32.totalorder %v39, 8
    %s97 = sld [smem:[#allocation2 + $0x10]]
    %v98 = vstv %s97
    %v99 = vsel %vm96, %v98, %v92
    %s100 = sld [smem:[#allocation2 + $0x11]]
    %v101 = vstv %s100
    %v102 = vsel %vm96, %v101, %v95
    %vm103 = vcmp.eq.s32.totalorder %v39, 9
    %s104 = sld [smem:[#allocation2 + $0x12]]
    %v105 = vstv %s104
    %v106 = vsel %vm103, %v105, %v99
    %s107 = sld [smem:[#allocation2 + $0x13]]
    %v108 = vstv %s107
    %v109 = vsel %vm103, %v108, %v102
    %vm110 = vcmp.eq.s32.totalorder %v39, 10
    %s111 = sld [smem:[#allocation2 + $0x14]]
    %v112 = vstv %s111
    %v113 = vsel %vm110, %v112, %v106
    %s114 = sld [smem:[#allocation2 + $0x15]]
    %v115 = vstv %s114
    %v116 = vsel %vm110, %v115, %v109
    %vm117 = vcmp.eq.s32.totalorder %v39, 11
    %s118 = sld [smem:[#allocation2 + $0x16]]
    %v119 = vstv %s118
    %v120 = vsel %vm117, %v119, %v113
    %s121 = sld [smem:[#allocation2 + $0x17]]
    %v122 = vstv %s121
    %v123 = vsel %vm117, %v122, %v116
    %vm124 = vcmp.eq.s32.totalorder %v39, 12
    %s125 = sld [smem:[#allocation2 + $0x18]]
    %v126 = vstv %s125
    %v127 = vsel %vm124, %v126, %v120
    %s128 = sld [smem:[#allocation2 + $0x19]]
    %v129 = vstv %s128
    %v130 = vsel %vm124, %v129, %v123
    %vm131 = vcmp.eq.s32.totalorder %v39, 13
    %s132 = sld [smem:[#allocation2 + $0x1a]]
    %v133 = vstv %s132
    %v134 = vsel %vm131, %v133, %v127
    %s135 = sld [smem:[#allocation2 + $0x1b]]
    %v136 = vstv %s135
    %v137 = vsel %vm131, %v136, %v130
    %vm138 = vcmp.eq.s32.totalorder %v39, 14
    %s139 = sld [smem:[#allocation2 + $0x1c]]
    %v140 = vstv %s139
    %v141 = vsel %vm138, %v140, %v134
    %s142 = sld [smem:[#allocation2 + $0x1d]]
    %v143 = vstv %s142
    %v144 = vsel %vm138, %v143, %v137
    %vm145 = vcmp.eq.s32.totalorder %v39, 15
    %s146 = sld [smem:[#allocation2 + $0x1e]]
    %v147 = vstv %s146
    %v148 = vsel %vm145, %v147, %v141
    %s149 = sld [smem:[#allocation2 + $0x1f]]
    %v150 = vstv %s149
    %v151 = vsel %vm145, %v150, %v144
    %s152 = sld [smem:[#allocation4]]
    %s153 = sld [smem:[#allocation4 + $0x1]]
    %s154 = sld [smem:[#allocation4 + $0x2]]
    %s155 = sld [smem:[#allocation4 + $0x3]]
    %s156 = sld [smem:[#allocation4 + $0x4]]
    %s157 = sld [smem:[#allocation4 + $0x5]]
    %s158 = sld [smem:[#allocation4 + $0x6]]
    %s159 = sld [smem:[#allocation4 + $0x7]]
    %s160 = sld [smem:[#allocation4 + $0x8]]
    %s161 = sld [smem:[#allocation4 + $0x9]]
    %v162 = vstv %s152
    %v163 = vmul.f32 %v148, %v162
    %v164 = vstv %s154
    %v165 = vmul.f32 %v151, %v164
    %v166 = vadd.f32 %v163, %v165
    %v167 = vstv %s160
    %v168 = vadd.f32 %v166, %v167
    %v169 = vstv %s153
    %v170 = vmul.f32 %v148, %v169
    %v171 = vstv %s155
    %v172 = vmul.f32 %v151, %v171
    %v173 = vadd.f32 %v170, %v172
    %v174 = vstv %s161
    %v175 = vadd.f32 %v173, %v174
    %v176 = vstv %s156
    %v177 = vstv %s157
    %v178 = vstv %s158
    %v179 = vstv %s159
    %v180 = vtanh.pop %v168
    %v181 = vtanh.pop %v175
    %v182 = vmul.f32 %v180, %v176
    %v184 = vrot.slane %v182, 7
    %v186 = vadd.f32 %v168, %v184
    %v187 = vmul.f32 %v181, %v178
    %v189 = vrot.slane %v187, 7
    %v191 = vadd.f32 %v186, %v189
    %v192 = vmul.f32 %v180, %v177
    %v194 = vrot.slane %v192, 7
    %v196 = vadd.f32 %v175, %v194
    %v197 = vmul.f32 %v181, %v179
    %v199 = vrot.slane %v197, 7
    %v201 = vadd.f32 %v196, %v199
    %v202 = vtanh.pop %v191
    %v203 = vtanh.pop %v201
    %v204 = vmul.f32 %v202, %v176
    %v206 = vrot.slane %v204, 7
    %v208 = vadd.f32 %v168, %v206
    %v209 = vmul.f32 %v203, %v178
    %v211 = vrot.slane %v209, 7
    %v213 = vadd.f32 %v208, %v211
    %v214 = vmul.f32 %v202, %v177
    %v216 = vrot.slane %v214, 7
    %v218 = vadd.f32 %v175, %v216
    %v219 = vmul.f32 %v203, %v179
    %v221 = vrot.slane %v219, 7
    %v223 = vadd.f32 %v218, %v221
    %v224 = vtanh.pop %v213
    %v225 = vtanh.pop %v223
    %v226 = vmul.f32 %v224, %v176
    %v228 = vrot.slane %v226, 7
    %v230 = vadd.f32 %v168, %v228
    %v231 = vmul.f32 %v225, %v178
    %v233 = vrot.slane %v231, 7
    %v235 = vadd.f32 %v230, %v233
    %v236 = vmul.f32 %v224, %v177
    %v238 = vrot.slane %v236, 7
    %v240 = vadd.f32 %v175, %v238
    %v241 = vmul.f32 %v225, %v179
    %v243 = vrot.slane %v241, 7
    %v245 = vadd.f32 %v240, %v243
    %v246 = vtanh.pop %v235
    %v247 = vtanh.pop %v245
    %v248 = vmul.f32 %v246, %v176
    %v250 = vrot.slane %v248, 7
    %v252 = vadd.f32 %v168, %v250
    %v253 = vmul.f32 %v247, %v178
    %v255 = vrot.slane %v253, 7
    %v257 = vadd.f32 %v252, %v255
    %v258 = vmul.f32 %v246, %v177
    %v260 = vrot.slane %v258, 7
    %v262 = vadd.f32 %v175, %v260
    %v263 = vmul.f32 %v247, %v179
    %v265 = vrot.slane %v263, 7
    %v267 = vadd.f32 %v262, %v265
    %v268 = vtanh.pop %v257
    %v269 = vtanh.pop %v267
    %v270 = vmul.f32 %v268, %v176
    %v272 = vrot.slane %v270, 7
    %v274 = vadd.f32 %v168, %v272
    %v275 = vmul.f32 %v269, %v178
    %v277 = vrot.slane %v275, 7
    %v279 = vadd.f32 %v274, %v277
    %v280 = vmul.f32 %v268, %v177
    %v282 = vrot.slane %v280, 7
    %v284 = vadd.f32 %v175, %v282
    %v285 = vmul.f32 %v269, %v179
    %v287 = vrot.slane %v285, 7
    %v289 = vadd.f32 %v284, %v287
    %v290 = vtanh.pop %v279
    %v291 = vtanh.pop %v289
    %v292 = vmul.f32 %v290, %v176
    %v294 = vrot.slane %v292, 7
    %v296 = vadd.f32 %v168, %v294
    %v297 = vmul.f32 %v291, %v178
    %v299 = vrot.slane %v297, 7
    %v301 = vadd.f32 %v296, %v299
    %v302 = vmul.f32 %v290, %v177
    %v304 = vrot.slane %v302, 7
    %v306 = vadd.f32 %v175, %v304
    %v307 = vmul.f32 %v291, %v179
    %v309 = vrot.slane %v307, 7
    %v311 = vadd.f32 %v306, %v309
    %v312 = vtanh.pop %v301
    %v313 = vtanh.pop %v311
    %v314 = vmul.f32 %v312, %v176
    %v316 = vrot.slane %v314, 7
    %v318 = vadd.f32 %v168, %v316
    %v319 = vmul.f32 %v313, %v178
    %v321 = vrot.slane %v319, 7
    %v323 = vadd.f32 %v318, %v321
    %v324 = vmul.f32 %v312, %v177
    %v326 = vrot.slane %v324, 7
    %v328 = vadd.f32 %v175, %v326
    %v329 = vmul.f32 %v313, %v179
    %v331 = vrot.slane %v329, 7
    %v333 = vadd.f32 %v328, %v331
    %v334 = vtanh.pop %v323
    %v335 = vtanh.pop %v333
    %vm336 = vcmask 15367
    %337 = vst.msk [vmem:[%s3 - $0x7] sm:$0x80] %vm336, %v334
    %338 = vst.msk [vmem:[%s3 - $0x6] sm:$0x80] %vm336, %v335
    // Predicated region
    $region22: #{rnn_forward.1} parent=1 // pred_check
      _
    $region23: #{rnn_forward.1} parent=1 // pred_check_branch
      %340 = sbr.rel (0) target = $region25
    $region24: #{rnn_forward.1} parent=1 // pred_region
      _
    $region25: #{rnn_forward.1} parent=1 // pred_fallthru
      _
    // Predicated region
    $region26: #{rnn_forward.1} parent=1 // pred_check
      _
    $region27: #{rnn_forward.1} parent=1 // pred_check_branch
      %342 = sbr.rel (0) target = $region29
    $region28: #{rnn_forward.1} parent=1 // pred_region
      _
    $region29: #{rnn_forward.1} parent=1 // pred_fallthru
      _
    %343 = vsyncpa [#allocation3], 1
    %344 = vsyncpa [#allocation5], 1

</llo_original>
